<compile_context>
chip_gen: v7x
topology: tpu7x:2x2x1
jax: 0.10.0
libtpu: 0.0.40
codegen_flags: <defaults>
</compile_context>

<pallas_src>
import jax
import jax.numpy as jnp
from jax.experimental import pallas as pl
from jax.experimental.pallas import tpu as pltpu


def _round_up(x: int, m: int) -> int:
    return (x + m - 1) // m * m


def _pick_col_tile(total: int, preferred: int) -> int:
    """Largest of (preferred, 512, 256, 128) that divides `total` (a multiple of 128)."""
    for t in (preferred, 512, 256, 128):
        if 0 < t <= total and total % t == 0:
            return t
    return total


def bert_pooler_kernel(x_ref, w_ref, b_ref, o_ref):
    # x_ref: (TB, Hp_in)  bf16 first-token activations for this row tile
    # w_ref: (Hp_in, TN)  bf16 dense-weight column block, (in, out) layout
    # b_ref: (1, TN)      f32 bias column block
    # o_ref: (TB, TN)     f32 output tile
    y = jnp.dot(x_ref[...], w_ref[...], preferred_element_type=jnp.float32)  # MXU, f32 acc
    o_ref[...] = jnp.tanh(y + b_ref[...])                                    # VPU + EUP, f32


def prepare_pooler_params(weight, bias, *, torch_layout=True,
                          compute_dtype=jnp.bfloat16):
    """One-time weight/bias prep — call OUTSIDE the per-step path.

    weight: (H, H). With torch_layout=True this is torch.nn.Linear's (out, in)
            storage; it is transposed here to the (in, out) layout the kernel
            consumes (y = x @ w + b).
    bias:   (H,)
    Returns (w_prep, b_prep): weight padded to multiples of 128 and cast to
    compute_dtype (bf16 -> half the weight DMA, native MXU dtype); bias padded
    and kept f32 so the add + tanh stay f32 on every chip generation.
    """
    if torch_layout:
        weight = weight.T
    h_in, h_out = weight.shape
    hp_in, hp_out = _round_up(h_in, 128), _round_up(h_out, 128)
    if (hp_in, hp_out) != (h_in, h_out):
        weight = jnp.pad(weight, ((0, hp_in - h_in), (0, hp_out - h_out)))
    w_prep = weight.astype(compute_dtype)
    b_prep = bias.reshape(1, h_out).astype(jnp.float32)
    if hp_out != h_out:
        b_prep = jnp.pad(b_prep, ((0, 0), (0, hp_out - h_out)))
    return w_prep, b_prep


def bert_pooler(hidden_states, w_prep, b_prep, *, out_features=None,
                block_rows=256, block_cols=512):
    """BertPooler forward: tanh(hidden_states[:, 0] @ W + b).

    hidden_states: (B, S, H) float32
    w_prep, b_prep: outputs of prepare_pooler_params (padded / cast / (in,out))
    returns: (B, out_features) float32 (out_features defaults to H).
    """
    B, S, H = hidden_states.shape
    hp_in, hp_out = w_prep.shape
    assert hp_in >= H and hp_in % 128 == 0 and hp_out % 128 == 0
    out_features = H if out_features is None else out_features

    # Only the first token participates; slice outside the kernel so the
    # pallas_call never DMAs the other S-1 rows.  Cast to the matmul dtype
    # (bf16): only the MXU sees bf16, accumulation / bias / tanh stay f32.
    # TODO(synk): when H % 128 == 0 the slice could also be folded into the
    # kernel via an x BlockSpec of (TB, pl.Squeezed(), H) to save one B*H copy.
    x0 = hidden_states[:, 0, :].astype(w_prep.dtype)          # (B, H)

    # Row tile: one aligned tile for small batches, block_rows for big ones.
    TB = block_rows if B >= block_rows else _round_up(B, 8)
    Bp = _round_up(B, TB)
    pad_rows, pad_cols = Bp - B, hp_in - H
    if pad_rows or pad_cols:              # skipped entirely when already aligned
        x0 = jnp.pad(x0, ((0, pad_rows), (0, pad_cols)))

    TN = _pick_col_tile(hp_out, block_cols)
    nb, nc = Bp // TB, hp_out // TN

    out = pl.pallas_call(
        bert_pooler_kernel,
        out_shape=jax.ShapeDtypeStruct((Bp, hp_out), jnp.float32),
        grid=(nb, nc),
        in_specs=[
            # First-token rows: constant across the column axis -> fetched once
            # per row tile and reused for every output-column step.
            pl.BlockSpec((TB, hp_in), lambda i, j: (i, 0)),
            # Weight column block: index varies with j, so default double
            # buffering is kept to overlap the dominant weight DMA with the MXU.
            pl.BlockSpec((hp_in, TN), lambda i, j: (0, j)),
            # Bias column block (tiny, f32).
            pl.BlockSpec((1, TN), lambda i, j: (0, j)),
        ],
        out_specs=pl.BlockSpec((TB, TN), lambda i, j: (i, j)),
        compiler_params=pltpu.CompilerParams(
            dimension_semantics=("parallel", "parallel")),
    )(x0, w_prep, b_prep)

    return out[:B, :out_features]


def reference_bert_pooler(hidden_states, weight, bias):
    """Pure-JAX f32 reference mirroring PyTorch BertPooler.forward.
    `weight` is in torch layout (out_features, in_features)."""
    first_token = hidden_states[:, 0]
    return jnp.tanh(first_token @ weight.T + bias)


if __name__ == "__main__":
    B, S, H = 2, 8, 32   # batch, seq, hidden_size

    key = jax.random.PRNGKey(0)
    k_x, k_w, k_b = jax.random.split(key, 3)

    hidden_states = jax.random.normal(k_x, (B, S, H), jnp.float32)
    # torch.nn.Linear(H, H) stores its weight as (out_features, in_features).
    weight = (0.02 * jax.random.normal(k_w, (H, H))).astype(jnp.float32)
    bias = (0.02 * jax.random.normal(k_b, (H,))).astype(jnp.float32)

    # One-time prep: transpose to (in,out), pad to 128 multiples, cast to bf16.
    w_prep, b_prep = prepare_pooler_params(weight, bias, torch_layout=True)

    out = bert_pooler(hidden_states, w_prep, b_prep)
    out = jax.block_until_ready(out)

    ref = reference_bert_pooler(hidden_states, weight, bias)
    assert out.shape == (B, H) and out.dtype == jnp.float32
    # bf16 matmul operands (f32 accumulation) vs the pure-f32 reference:
    # relaxed tolerance, as flagged in the review's correctness notes.
    err = jnp.max(jnp.abs(out - ref))
    assert jnp.allclose(out, ref, atol=1e-2, rtol=1e-2), f"max abs err {err}"

    print("KERNEL_OK")
</pallas_src>

<mosaic_0001>
module attributes {stable_mosaic.version = 11 : i64} {
  func.func @bert_pooler_kernel(%arg0: i32, %arg1: i32, %arg2: memref<8x128xbf16, #tpu.memory_space<vmem>>, %arg3: memref<128x128xbf16, #tpu.memory_space<vmem>>, %arg4: memref<1x128xf32, #tpu.memory_space<vmem>>, %arg5: memref<8x128xf32, #tpu.memory_space<vmem>>) attributes {dimension_semantics = [#tpu.dimension_semantics<parallel>, #tpu.dimension_semantics<parallel>], iteration_bounds = array<i64: 1, 1>, scalar_prefetch = 0 : i64, scratch_operands = 0 : i64, tpu.core_type = #tpu.core_type<tc>, window_params = [{transform_indices = @transform_0, window_bounds = array<i64: 8, 128>}, {transform_indices = @transform_1, window_bounds = array<i64: 128, 128>}, {transform_indices = @transform_2, window_bounds = array<i64: 1, 128>}, {transform_indices = @transform_3, window_bounds = array<i64: 8, 128>}]} {
    %c0 = arith.constant 0 : index
    %c0_0 = arith.constant 0 : index
    %0 = vector.load %arg2[%c0, %c0_0] : memref<8x128xbf16, #tpu.memory_space<vmem>>, vector<8x128xbf16>
    %c0_1 = arith.constant 0 : index
    %c0_2 = arith.constant 0 : index
    %1 = vector.load %arg3[%c0_1, %c0_2] : memref<128x128xbf16, #tpu.memory_space<vmem>>, vector<128x128xbf16>
    %cst = arith.constant dense<0.000000e+00> : vector<8x128xf32>
    %2 = tpu.matmul %0, %1, %cst {dimension_numbers = #tpu.dot_dimension_numbers<[1], [0], [0], [1], [0, 0, 1, 1], [], []>} : vector<8x128xbf16>, vector<128x128xbf16>, vector<8x128xf32> -> vector<8x128xf32>
    %c0_3 = arith.constant 0 : index
    %c0_4 = arith.constant 0 : index
    %3 = vector.load %arg4[%c0_3, %c0_4] : memref<1x128xf32, #tpu.memory_space<vmem>>, vector<1x128xf32>
    %4 = vector.broadcast %3 : vector<1x128xf32> to vector<8x128xf32>
    %5 = arith.addf %2, %4 : vector<8x128xf32>
    %6 = math.tanh %5 : vector<8x128xf32>
    %c0_5 = arith.constant 0 : index
    %c0_6 = arith.constant 0 : index
    %7 = vector.load %arg5[%c0_5, %c0_6] : memref<8x128xf32, #tpu.memory_space<vmem>>, vector<8x128xf32>
    tpu.vector_store %arg5[%c0_5, %c0_6], %6 {strides = array<i32>} : memref<8x128xf32, #tpu.memory_space<vmem>>, vector<8x128xf32>,
    return
  }
  func.func @transform_0(%arg0: i32, %arg1: i32) -> (i32, i32) {
    %c0_i32 = arith.constant 0 : i32
    %c0_i32_0 = arith.constant 0 : i32
    return %arg0, %c0_i32 : i32, i32
  }
  func.func @transform_1(%arg0: i32, %arg1: i32) -> (i32, i32) {
    %c0_i32 = arith.constant 0 : i32
    %c0_i32_0 = arith.constant 0 : i32
    return %c0_i32, %arg1 : i32, i32
  }
  func.func @transform_2(%arg0: i32, %arg1: i32) -> (i32, i32) {
    %c0_i32 = arith.constant 0 : i32
    %c0_i32_0 = arith.constant 0 : i32
    return %c0_i32, %arg1 : i32, i32
  }
  func.func @transform_3(%arg0: i32, %arg1: i32) -> (i32, i32) {
    %c0_i32 = arith.constant 0 : i32
    return %arg0, %arg1 : i32, i32
  }
}

</mosaic_0001>

<llo_original>
// kernel: tpu_custom_call.1
$region0: #{tpu_custom_call.1}
  #allocation0 [shape = 'u32[]', space=smem, size = 0x4, offset = 0x4, fixed_abs, tag = 'smem constant byte address 0x4 - core index']
  #allocation1 [shape = 'u32[144,128]{1,0:T(1,128)}', space=vmem, size = 0x12000, scoped, tag = 'internal scratch']
  %s0 = inlined_call_operand.hbm [shape: bf16[8,128], index: 0, kind: input, shape index: {}]
  %s1 = inlined_call_operand.hbm [shape: bf16[128,128], index: 1, kind: input, shape index: {}]
  %s2 = inlined_call_operand.vmem [shape: f32[1,128], index: 2, kind: input, shape index: {}]
  %s3 = inlined_call_operand.hbm [shape: f32[8,128], index: 3, kind: output, shape index: {}]
  %s4 = sld [smem:[#allocation0]]
  $region30: #{tpu_custom_call.1} parent=0
    _
  %s6 = ssub.s32 1, %s4
  %s7 = scalar_select 0, %s6, %s4
  $region1: #{tpu_custom_call.1} parent=0
    #allocation2 [shape = 'u8[2048]{0}', space=vmem, size = 0x800, scoped, tag = 'input window, operand 0, single buffered']
    #allocation3 [shape = 's32[1]{0}', space=sflag, size = 0x4, scoped, tag = 'scoped memory for tpu_custom_call.1']
    #allocation4 [shape = 's32[1]{0}', space=sflag, size = 0x4, scoped, tag = 'scoped memory for tpu_custom_call.1']
    #allocation5 [shape = 'u8[32768]{0}', space=vmem, size = 0x8000, scoped, tag = 'input window, operand 1, single buffered']
    #allocation6 [shape = 's32[1]{0}', space=sflag, size = 0x4, scoped, tag = 'scoped memory for tpu_custom_call.1']
    #allocation7 [shape = 'u8[4096]{0}', space=vmem, size = 0x1000, scoped, tag = 'output window, operand 0, single buffered']
    %8 = vsyncpa [#allocation3], 0
    %9 = vsyncpa [#allocation6], 0
    %10 = vsyncpa [#allocation4], 0
    // Predicated region
    $region2: #{tpu_custom_call.1} parent=1 // pred_check
      _
    $region3: #{tpu_custom_call.1} parent=1 // pred_check_branch
      %12 = sbr.rel (0) target = $region5
    $region4: #{tpu_custom_call.1} parent=1 // pred_region
      %s14 = ssub.s32 64, 64
      %15 = vsyncadd [#allocation3], %s14
      %s17 = sshll.u32 [#allocation2], 4
      %s18 = int_to_ptr.vmem [resolvable:$true] %s17
      %20 = dma.hbm_to_vmem [thread:$0]  %s0, 64, %s18, [#allocation3]
    $region5: #{tpu_custom_call.1} parent=1 // pred_fallthru
      _
    // Predicated region
    $region6: #{tpu_custom_call.1} parent=1 // pred_check
      _
    $region7: #{tpu_custom_call.1} parent=1 // pred_check_branch
      %22 = sbr.rel (0) target = $region9
    $region8: #{tpu_custom_call.1} parent=1 // pred_region
      %s24 = ssub.s32 1024, 1024
      %25 = vsyncadd [#allocation6], %s24
      %s26 = sshll.u32 [#allocation5], 4
      %s27 = int_to_ptr.vmem [resolvable:$true] %s26
      %32 = dma.hbm_to_vmem [thread:$0]  %s1, 1024, %s27, [#allocation6], 64, 64, 4
    $region9: #{tpu_custom_call.1} parent=1 // pred_fallthru
      _
    // Predicated region
    $region10: #{tpu_custom_call.1} parent=1 // pred_check
      _
    $region11: #{tpu_custom_call.1} parent=1 // pred_check_branch
      %34 = sbr.rel (0) target = $region13
    $region12: #{tpu_custom_call.1} parent=1 // pred_region
      _
    $region13: #{tpu_custom_call.1} parent=1 // pred_fallthru
      _
    // Predicated region
    $region14: #{tpu_custom_call.1} parent=1 // pred_check
      _
    $region15: #{tpu_custom_call.1} parent=1 // pred_check_branch
      %36 = sbr.rel (0) target = $region17
    $region16: #{tpu_custom_call.1} parent=1 // pred_region
      %37 = dma.done [#allocation3], 64
    $region17: #{tpu_custom_call.1} parent=1 // pred_fallthru
      _
    // Predicated region
    $region18: #{tpu_custom_call.1} parent=1 // pred_check
      _
    $region19: #{tpu_custom_call.1} parent=1 // pred_check_branch
      %39 = sbr.rel (0) target = $region21
    $region20: #{tpu_custom_call.1} parent=1 // pred_region
      %40 = dma.done [#allocation6], 1024
    $region21: #{tpu_custom_call.1} parent=1 // pred_fallthru
      _
    %v42 = vld [vmem:[#allocation2] sm:$0xf]
    %v43 = vld [vmem:[#allocation5] sm:$0xf]
    %v44 = vld [vmem:[#allocation5 + $0x4] sm:$0xf]
    %v45 = vld [vmem:[#allocation5 + $0x8] sm:$0xf]
    %v46 = vld [vmem:[#allocation5 + $0xc] sm:$0xf]
    %v47 = vld [vmem:[#allocation5 + $0x10] sm:$0xf]
    %v48 = vld [vmem:[#allocation5 + $0x14] sm:$0xf]
    %v49 = vld [vmem:[#allocation5 + $0x18] sm:$0xf]
    %v50 = vld [vmem:[#allocation5 + $0x1c] sm:$0xf]
    %v51 = vld [vmem:[#allocation5 + $0x20] sm:$0xf]
    %v52 = vld [vmem:[#allocation5 + $0x24] sm:$0xf]
    %v53 = vld [vmem:[#allocation5 + $0x28] sm:$0xf]
    %v54 = vld [vmem:[#allocation5 + $0x2c] sm:$0xf]
    %v55 = vld [vmem:[#allocation5 + $0x30] sm:$0xf]
    %v56 = vld [vmem:[#allocation5 + $0x34] sm:$0xf]
    %v57 = vld [vmem:[#allocation5 + $0x38] sm:$0xf]
    %v58 = vld [vmem:[#allocation5 + $0x3c] sm:$0xf]
    %v59 = vld [vmem:[%s2] sm:$0x1]
    %v61 = vlaneseq
    %v62 = vshrl.u32 %v61, 7
    %v63 = vsub.s32 0, %v62
    %v64 = vrot.slane %v59, %v63
    %v82 = vunpack.c.l.b16 %v43
    %v83 = vunpack.c.l.b16 %v44
    %v84 = vunpack.c.l.b16 %v45
    %v85 = vunpack.c.l.b16 %v46
    %v86 = vunpack.c.l.b16 %v47
    %v87 = vunpack.c.l.b16 %v48
    %v88 = vunpack.c.l.b16 %v49
    %v89 = vunpack.c.l.b16 %v50
    %v90 = vunpack.c.l.b16 %v51
    %v91 = vunpack.c.l.b16 %v52
    %v92 = vunpack.c.l.b16 %v53
    %v93 = vunpack.c.l.b16 %v54
    %v94 = vunpack.c.l.b16 %v55
    %v95 = vunpack.c.l.b16 %v56
    %v96 = vunpack.c.l.b16 %v57
    %v97 = vunpack.c.l.b16 %v58
    %v98 = vpack.c.b16 %v83, %v82
    %v99 = vpack.c.b16 %v85, %v84
    %v100 = vpack.c.b16 %v87, %v86
    %v101 = vpack.c.b16 %v89, %v88
    %v102 = vpack.c.b16 %v91, %v90
    %v103 = vpack.c.b16 %v93, %v92
    %v104 = vpack.c.b16 %v95, %v94
    %v105 = vpack.c.b16 %v97, %v96
    %114 = vmatprep.subr.bf16.mxu0 0
    %115 = vmatpush1.bf16.msra.mxu0 %v98
    %116 = vmatprep.subr.bf16.mxu0 0
    %117 = vmatpush1.bf16.msra.mxu0 %v99
    %118 = vmatprep.subr.bf16.mxu0 0
    %119 = vmatpush1.bf16.msra.mxu0 %v100
    %120 = vmatprep.subr.bf16.mxu0 0
    %121 = vmatpush1.bf16.msra.mxu0 %v101
    %122 = vmatprep.subr.bf16.mxu0 0
    %123 = vmatpush1.bf16.msra.mxu0 %v102
    %124 = vmatprep.subr.bf16.mxu0 0
    %125 = vmatpush1.bf16.msra.mxu0 %v103
    %126 = vmatprep.subr.bf16.mxu0 0
    %127 = vmatpush1.bf16.msra.mxu0 %v104
    %128 = vmatprep.subr.bf16.mxu0 0
    %129 = vmatpush1.bf16.msra.mxu0 %v105
    %130 = vmatprep.subr.bf16.mxu0 0
    %131 = vmatpush1.bf16.msra.mxu0 0
    %132 = vmatprep.subr.bf16.mxu0 0
    %133 = vmatpush1.bf16.msra.mxu0 0
    %134 = vmatprep.subr.bf16.mxu0 0
    %135 = vmatpush1.bf16.msra.mxu0 0
    %136 = vmatprep.subr.bf16.mxu0 0
    %137 = vmatpush1.bf16.msra.mxu0 0
    %138 = vmatprep.subr.bf16.mxu0 0
    %139 = vmatpush1.bf16.msra.mxu0 0
    %140 = vmatprep.subr.bf16.mxu0 0
    %141 = vmatpush1.bf16.msra.mxu0 0
    %142 = vmatprep.subr.bf16.mxu0 0
    %143 = vmatpush1.bf16.msra.mxu0 0
    %144 = vmatprep.subr.bf16.mxu0 0
    %145 = vmatpush1.bf16.msra.mxu0 0
    %146 = vmatprep.mubr.bf16.mxu0 0
    %147 = vmatmul.mubr.bf16.gmra.mrb[0].mxu0 %v42
    %v148 = vpop.f32.mrb[0].mxu0
    %v149 = vadd.f32 %v64, %v148
    %v150 = vpop.f32.mrb[0].mxu0
    %v151 = vpop.f32.mrb[0].mxu0
    %v152 = vpop.f32.mrb[0].mxu0
    %153 = vdwg.mxu0
    %v154 = vtanh.pop %v149
    %155 = vst [vmem:[#allocation7] sm:$0xff] %v154
    // Predicated region
    $region22: #{tpu_custom_call.1} parent=1 // pred_check
      _
    $region23: #{tpu_custom_call.1} parent=1 // pred_check_branch
      %157 = sbr.rel (0) target = $region25
    $region24: #{tpu_custom_call.1} parent=1 // pred_region
      %s159 = ssub.s32 128, 128
      %160 = vsyncadd [#allocation4], %s159
      %s162 = sshll.u32 [#allocation7], 4
      %s163 = int_to_ptr.vmem [resolvable:$true] %s162
      %165 = dma.vmem_to_hbm [thread:$0]  %s163, 128, %s3, [#allocation4]
    $region25: #{tpu_custom_call.1} parent=1 // pred_fallthru
      _
    // Predicated region
    $region26: #{tpu_custom_call.1} parent=1 // pred_check
      _
    $region27: #{tpu_custom_call.1} parent=1 // pred_check_branch
      %167 = sbr.rel (0) target = $region29
    $region28: #{tpu_custom_call.1} parent=1 // pred_region
      %168 = dma.done [#allocation4], 128
    $region29: #{tpu_custom_call.1} parent=1 // pred_fallthru
      _
    %169 = vsyncpa [#allocation3], 1
    %170 = vsyncpa [#allocation6], 1
    %171 = vsyncpa [#allocation4], 1

</llo_original>
